<compile_context>
chip_gen: v5e
topology: v5e:2x2
jax: 0.10.0
libtpu: 0.0.40
codegen_flags: <defaults>
</compile_context>

<pallas_src>
import functools

import jax
import jax.numpy as jnp
from jax.experimental import pallas as pl
from jax.experimental.pallas import tpu as pltpu


def _cdiv(a, b):
    return -(-a // b)


def _round_up(a, b):
    return _cdiv(a, b) * b


def _vmem_capacity_bytes():
    """Physical VMEM per TensorCore; conservative fallback if unqueryable."""
    try:
        cap = int(getattr(pltpu.get_tpu_info(), "vmem_capacity_bytes", 0))
        if cap > 0:
            return cap
    except Exception:
        pass
    return 64 * 1024 * 1024  # v7x per-TC size (smallest of v5e/v6e/v7x)


def _cross_stitch_kernel(w_ref, *refs, num_tasks, wh, upper):
    """One grid step: a block of (b, c) rows of every task plane.

    w_ref : (T, T) masked cross-stitch matrix, resident in SMEM (scalar reads).
    refs  : T input refs (block_rows, wh) followed by T output refs.
    """
    T = num_tasks
    in_refs = refs[:T]
    out_refs = refs[T:]

    # All T*T (masked) weights as traced scalars, read once from SMEM.
    wv = [[w_ref[i, j] for j in range(T)] for i in range(T)]

    # Lane index within a plane and its residue mod T.  Kept at (1, wh): the
    # coefficient vectors are row-invariant, so this work is amortized over
    # block_rows sublanes and the FMAs broadcast them.
    m = jax.lax.broadcasted_iota(jnp.int32, (1, wh), 1)
    m_mod_t = m % T

    def coeff_row(jm, s):
        # coeff(q) = W[q%T - s, q%T]; 0 when the source task index is out of
        # range (which also covers the masked-out triangle).
        coeff = jnp.zeros((1, wh), jnp.float32)
        for jj in range(T):
            ii = jj - s
            if 0 <= ii < T:
                coeff = jnp.where(jm == jj, wv[ii][jj].astype(jnp.float32), coeff)
        return coeff

    if upper:
        shifts = list(range(T))            # slab[q - s], s >= 0 -> neighbour = plane t-1
        plane_order = list(range(T))       # neighbour processed first
    else:
        shifts = list(range(0, -T, -1))    # slab[q - s], s <= 0 -> neighbour = plane t+1
        plane_order = list(range(T - 1, -1, -1))

    prev_rolls = None                      # lane-rolls of the previously processed plane
    for t in plane_order:
        # Keep data in the input dtype (bf16 stays bf16); upcast happens only
        # inside the f32 multiply-accumulate, cast back once at the store.
        x_t = in_refs[t][...]

        # q % T for this plane (q = t*wh + m); t*wh % T is a static constant.
        jm = m_mod_t + ((t * wh) % T)
        jm = jnp.where(jm >= T, jm - T, jm)

        # One roll of this plane per non-zero shift (XLU).  Shared with the
        # neighbouring plane's boundary lanes so each plane is rolled exactly
        # once per shift.
        cur_rolls = [pltpu.roll(x_t, shift=s % wh, axis=1) for s in shifts[1:]]

        acc = coeff_row(jm, 0) * x_t       # f32 accumulator
        for k, s in enumerate(shifts[1:]):
            src = cur_rolls[k]
            if prev_rolls is not None:
                # Lanes whose source q - s falls in the neighbouring plane:
                # first |s| lanes (upper) / last |s| lanes (lower).
                boundary = (m < s) if upper else (m >= wh + s)
                src = jnp.where(boundary, prev_rolls[k], src)
            # else: the wrapped lanes provably have coefficient 0.
            acc = acc + coeff_row(jm, s) * src

        out_refs[t][...] = acc.astype(out_refs[t].dtype)
        prev_rolls = cur_rolls


@functools.partial(jax.jit, static_argnames=("upper_triangular",))
def triangular_cross_stitch(features, cross_stitch, upper_triangular=True):
    """features: tuple of (B, C, W, H) arrays (NCHW), one per task."""
    features = tuple(features)
    T = len(features)
    b, c, w, h = features[0].shape
    bc, wh = b * c, w * h
    dtype = features[0].dtype
    itemsize = jnp.dtype(dtype).itemsize

    if wh < T:
        raise ValueError("W*H must be >= num_tasks for this kernel.")

    if upper_triangular:
        mask = jnp.triu(jnp.ones((T, T), jnp.float32))
    else:
        mask = jnp.tril(jnp.ones((T, T), jnp.float32))
    w_eff = cross_stitch.astype(jnp.float32) * mask       # (T, T) -> SMEM

    # Free (bitcast) reshapes: each task plane, row-major, already is the slab
    # slice the view(-1, T) matmul rows are built from -- no stack in HBM.
    feats2d = [f.reshape(bc, wh) for f in features]

    # ---- generation-aware block / VMEM sizing ------------------------------
    vmem_cap = _vmem_capacity_bytes()                      # 128 MiB v5e/v6e, 64 MiB v7x
    vmem_limit = min(int(0.60 * vmem_cap), vmem_cap - (4 << 20))

    # Real per-row footprint of one grid step:
    #   double-buffered inputs + outputs (2 x T each), plus in-kernel
    #   temporaries: x_t + 2*(T-1) lane-rolls + boundary select (input dtype)
    #   and ~2 wh-wide f32 live values (accumulator + product).
    io_row_bytes = 4 * T * wh * itemsize
    tmp_row_bytes = 2 * T * wh * itemsize + 2 * wh * 4
    per_row_bytes = io_row_bytes + tmp_row_bytes
    budget = vmem_limit - (2 << 20)                        # iota/coeff/compiler slack

    # Sublane granularity: 8 rows for 32-bit, 16 for 16-bit, 32 for 8-bit.
    granule = max(8, 32 // max(1, itemsize))
    max_rows_vmem = (budget // per_row_bytes) // granule * granule
    if max_rows_vmem < granule:
        # TODO(synk): add spatial (halo) tiling along W*H for planes too large
        # to fit even a granule-row block; fail loudly instead of spilling.
        raise ValueError(
            f"W*H={wh} too large for a single VMEM block "
            f"(needs {per_row_bytes * granule} B, budget {budget} B).")

    # Keep >= 4 grid steps when B*C allows, so the 'parallel' axis can shard
    # across v7x's two TensorCores and the DMA pipeline has work to overlap.
    min_steps = 4
    rows_for_split = _round_up(_cdiv(bc, min_steps), granule)
    block_rows = max(granule, min(max_rows_vmem, rows_for_split))
    block_rows = min(block_rows, _round_up(bc, granule))
    grid = (_cdiv(bc, block_rows),)

    kernel = functools.partial(_cross_stitch_kernel, num_tasks=T, wh=wh,
                               upper=bool(upper_triangular))

    # NOTE: when W*H is not a multiple of 128 the block's last dim equals the
    # full plane, so loads/stores become masked (correct, just slower).
    # TODO(synk): lane-pad planes in-kernel for non-128-multiple W*H.
    outs = pl.pallas_call(
        kernel,
        out_shape=tuple(jax.ShapeDtypeStruct((bc, wh), dtype) for _ in range(T)),
        grid_spec=pltpu.PrefetchScalarGridSpec(
            num_scalar_prefetch=0,
            grid=grid,
            in_specs=[pl.BlockSpec(memory_space=pltpu.MemorySpace.SMEM)] +
                     [pl.BlockSpec((block_rows, wh), lambda i: (i, 0))
                      for _ in range(T)],
            out_specs=tuple(pl.BlockSpec((block_rows, wh), lambda i: (i, 0))
                            for _ in range(T)),
        ),
        compiler_params=pltpu.CompilerParams(
            dimension_semantics=("parallel",),
            vmem_limit_bytes=int(vmem_limit)),
    )(w_eff, *feats2d)

    # Free (bitcast) reshapes back to NCHW; no unbind / slicing pass needed.
    return tuple(o.reshape(b, c, w, h) for o in outs)


def _reference(features, cross_stitch, upper_triangular=True):
    """Pure-JAX port of the PyTorch forward for verification."""
    num_tasks = len(features)
    b, c, w, h = features[0].shape
    stacked = jnp.stack(features, axis=2)
    x_flat = stacked.reshape(-1, num_tasks)
    if upper_triangular:
        mask = jnp.triu(jnp.ones((num_tasks, num_tasks), cross_stitch.dtype))
    else:
        mask = jnp.tril(jnp.ones((num_tasks, num_tasks), cross_stitch.dtype))
    y_flat = x_flat @ (cross_stitch * mask)
    stitched = y_flat.reshape(b, c, num_tasks, w, h)
    return tuple(stitched[:, :, t] for t in range(num_tasks))


if __name__ == "__main__":
    num_tasks = 3
    B, C, W, H = 2, 4, 16, 16

    key = jax.random.PRNGKey(0)
    k_feat, k_cs = jax.random.split(key)
    feat_keys = jax.random.split(k_feat, num_tasks)
    features = tuple(
        jax.random.normal(fk, (B, C, W, H), dtype=jnp.float32)
        for fk in feat_keys)

    # Parameter init per __init__ is identity (T, T); perturb deterministically
    # so the masked matmul is non-trivial.
    cross_stitch = (jnp.eye(num_tasks, dtype=jnp.float32)
                    + 0.1 * jax.random.normal(k_cs, (num_tasks, num_tasks),
                                              dtype=jnp.float32))

    for upper in (True, False):
        outs = triangular_cross_stitch(features, cross_stitch,
                                       upper_triangular=upper)
        outs = jax.block_until_ready(outs)
        refs = _reference(features, cross_stitch, upper_triangular=upper)
        for o, r in zip(outs, refs):
            assert o.shape == (B, C, W, H)
            assert jnp.allclose(o, r, atol=1e-5, rtol=1e-5)

    print("KERNEL_OK")
</pallas_src>

<mosaic_0001>
module attributes {stable_mosaic.version = 11 : i64} {
  func.func @_cross_stitch_kernel(%arg0: i32, %arg1: memref<3x3xf32, #tpu.memory_space<smem>>, %arg2: memref<8x256xf32, #tpu.memory_space<vmem>>, %arg3: memref<8x256xf32, #tpu.memory_space<vmem>>, %arg4: memref<8x256xf32, #tpu.memory_space<vmem>>, %arg5: memref<8x256xf32, #tpu.memory_space<vmem>>, %arg6: memref<8x256xf32, #tpu.memory_space<vmem>>, %arg7: memref<8x256xf32, #tpu.memory_space<vmem>>) attributes {dimension_semantics = [#tpu.dimension_semantics<parallel>], iteration_bounds = array<i64: 1>, scalar_prefetch = 0 : i64, scratch_operands = 0 : i64, tpu.core_type = #tpu.core_type<tc>, window_params = [{transform_indices = @transform_0, window_bounds = array<i64: 3, 3>}, {transform_indices = @transform_1, window_bounds = array<i64: 8, 256>}, {transform_indices = @transform_2, window_bounds = array<i64: 8, 256>}, {transform_indices = @transform_3, window_bounds = array<i64: 8, 256>}, {transform_indices = @transform_4, window_bounds = array<i64: 8, 256>}, {transform_indices = @transform_5, window_bounds = array<i64: 8, 256>}, {transform_indices = @transform_6, window_bounds = array<i64: 8, 256>}]} {
    %c0 = arith.constant 0 : index
    %c0_0 = arith.constant 0 : index
    %0 = memref.load %arg1[%c0, %c0_0] : memref<3x3xf32, #tpu.memory_space<smem>>
    %c0_1 = arith.constant 0 : index
    %c1 = arith.constant 1 : index
    %1 = memref.load %arg1[%c0_1, %c1] : memref<3x3xf32, #tpu.memory_space<smem>>
    %c0_2 = arith.constant 0 : index
    %c2 = arith.constant 2 : index
    %2 = memref.load %arg1[%c0_2, %c2] : memref<3x3xf32, #tpu.memory_space<smem>>
    %c1_3 = arith.constant 1 : index
    %c1_4 = arith.constant 1 : index
    %3 = memref.load %arg1[%c1_3, %c1_4] : memref<3x3xf32, #tpu.memory_space<smem>>
    %c1_5 = arith.constant 1 : index
    %c2_6 = arith.constant 2 : index
    %4 = memref.load %arg1[%c1_5, %c2_6] : memref<3x3xf32, #tpu.memory_space<smem>>
    %c2_7 = arith.constant 2 : index
    %c2_8 = arith.constant 2 : index
    %5 = memref.load %arg1[%c2_7, %c2_8] : memref<3x3xf32, #tpu.memory_space<smem>>
    %6 = tpu.iota {dimensions = array<i32: 1>} : vector<1x256xi32>
    %c3_i32 = arith.constant 3 : i32
    %c0_i32 = arith.constant 0 : i32
    %7 = arith.cmpi eq, %c3_i32, %c0_i32 : i32
    %c1_i32 = arith.constant 1 : i32
    %8 = arith.select %7, %c1_i32, %c3_i32 : i32
    %9 = vector.broadcast %8 : i32 to vector<1x256xi32>
    %10 = arith.remsi %6, %9 : vector<1x256xi32>
    %c0_i32_9 = arith.constant 0 : i32
    %11 = vector.broadcast %c0_i32_9 : i32 to vector<1x256xi32>
    %12 = arith.cmpi ne, %10, %11 : vector<1x256xi32>
    %c0_i32_10 = arith.constant 0 : i32
    %13 = vector.broadcast %c0_i32_10 : i32 to vector<1x256xi32>
    %14 = arith.cmpi slt, %10, %13 : vector<1x256xi32>
    %c0_i32_11 = arith.constant 0 : i32
    %15 = arith.cmpi slt, %8, %c0_i32_11 : i32
    %16 = vector.broadcast %15 : i1 to vector<1x256xi1>
    %17 = vector.broadcast %16 : vector<1x256xi1> to vector<1x256xi1>
    %18 = arith.xori %14, %17 : vector<1x256xi1>
    %19 = arith.andi %18, %12 : vector<1x256xi1>
    %20 = vector.broadcast %8 : i32 to vector<1x256xi32>
    %21 = arith.addi %10, %20 : vector<1x256xi32>
    %22 = arith.select %19, %21, %10 : vector<1x256xi1>, vector<1x256xi32>
    %c0_12 = arith.constant 0 : index
    %c0_13 = arith.constant 0 : index
    %23 = vector.load %arg2[%c0_12, %c0_13] : memref<8x256xf32, #tpu.memory_space<vmem>>, vector<8x256xf32>
    %c0_i32_14 = arith.constant 0 : i32
    %24 = vector.broadcast %c0_i32_14 : i32 to vector<1x256xi32>
    %25 = arith.addi %22, %24 : vector<1x256xi32>
    %c3_i32_15 = arith.constant 3 : i32
    %26 = vector.broadcast %c3_i32_15 : i32 to vector<1x256xi32>
    %27 = arith.cmpi sge, %25, %26 : vector<1x256xi32>
    %c3_i32_16 = arith.constant 3 : i32
    %28 = vector.broadcast %c3_i32_16 : i32 to vector<1x256xi32>
    %29 = arith.subi %25, %28 : vector<1x256xi32>
    %30 = arith.select %27, %29, %25 : vector<1x256xi1>, vector<1x256xi32>
    %c1_i32_17 = arith.constant 1 : i32
    %31 = tpu.dynamic_rotate %23 by %c1_i32_17 dim 1 : vector<8x256xf32>, i32 -> vector<8x256xf32>
    %c2_i32 = arith.constant 2 : i32
    %32 = tpu.dynamic_rotate %23 by %c2_i32 dim 1 : vector<8x256xf32>, i32 -> vector<8x256xf32>
    %cst = arith.constant 0.000000e+00 : f32
    %33 = vector.broadcast %cst : f32 to vector<1x256xf32>
    %c0_i32_18 = arith.constant 0 : i32
    %34 = vector.broadcast %c0_i32_18 : i32 to vector<1x256xi32>
    %35 = arith.cmpi eq, %30, %34 : vector<1x256xi32>
    %36 = vector.broadcast %0 : f32 to vector<1x256xf32>
    %37 = arith.select %35, %36, %33 : vector<1x256xi1>, vector<1x256xf32>
    %c1_i32_19 = arith.constant 1 : i32
    %38 = vector.broadcast %c1_i32_19 : i32 to vector<1x256xi32>
    %39 = arith.cmpi eq, %30, %38 : vector<1x256xi32>
    %40 = vector.broadcast %3 : f32 to vector<1x256xf32>
    %41 = arith.select %39, %40, %37 : vector<1x256xi1>, vector<1x256xf32>
    %c2_i32_20 = arith.constant 2 : i32
    %42 = vector.broadcast %c2_i32_20 : i32 to vector<1x256xi32>
    %43 = arith.cmpi eq, %30, %42 : vector<1x256xi32>
    %44 = vector.broadcast %5 : f32 to vector<1x256xf32>
    %45 = arith.select %43, %44, %41 : vector<1x256xi1>, vector<1x256xf32>
    %46 = vector.broadcast %45 : vector<1x256xf32> to vector<8x256xf32>
    %47 = arith.mulf %46, %23 : vector<8x256xf32>
    %cst_21 = arith.constant 0.000000e+00 : f32
    %48 = vector.broadcast %cst_21 : f32 to vector<1x256xf32>
    %c1_i32_22 = arith.constant 1 : i32
    %49 = vector.broadcast %c1_i32_22 : i32 to vector<1x256xi32>
    %50 = arith.cmpi eq, %30, %49 : vector<1x256xi32>
    %51 = vector.broadcast %1 : f32 to vector<1x256xf32>
    %52 = arith.select %50, %51, %48 : vector<1x256xi1>, vector<1x256xf32>
    %c2_i32_23 = arith.constant 2 : i32
    %53 = vector.broadcast %c2_i32_23 : i32 to vector<1x256xi32>
    %54 = arith.cmpi eq, %30, %53 : vector<1x256xi32>
    %55 = vector.broadcast %4 : f32 to vector<1x256xf32>
    %56 = arith.select %54, %55, %52 : vector<1x256xi1>, vector<1x256xf32>
    %57 = vector.broadcast %56 : vector<1x256xf32> to vector<8x256xf32>
    %58 = arith.mulf %57, %31 : vector<8x256xf32>
    %59 = arith.addf %47, %58 : vector<8x256xf32>
    %cst_24 = arith.constant 0.000000e+00 : f32
    %60 = vector.broadcast %cst_24 : f32 to vector<1x256xf32>
    %c2_i32_25 = arith.constant 2 : i32
    %61 = vector.broadcast %c2_i32_25 : i32 to vector<1x256xi32>
    %62 = arith.cmpi eq, %30, %61 : vector<1x256xi32>
    %63 = vector.broadcast %2 : f32 to vector<1x256xf32>
    %64 = arith.select %62, %63, %60 : vector<1x256xi1>, vector<1x256xf32>
    %65 = vector.broadcast %64 : vector<1x256xf32> to vector<8x256xf32>
    %66 = arith.mulf %65, %32 : vector<8x256xf32>
    %67 = arith.addf %59, %66 : vector<8x256xf32>
    %c0_26 = arith.constant 0 : index
    %c0_27 = arith.constant 0 : index
    %68 = vector.load %arg5[%c0_26, %c0_27] : memref<8x256xf32, #tpu.memory_space<vmem>>, vector<8x256xf32>
    tpu.vector_store %arg5[%c0_26, %c0_27], %67 {strides = array<i32>} : memref<8x256xf32, #tpu.memory_space<vmem>>, vector<8x256xf32>,
    %c0_28 = arith.constant 0 : index
    %c0_29 = arith.constant 0 : index
    %69 = vector.load %arg3[%c0_28, %c0_29] : memref<8x256xf32, #tpu.memory_space<vmem>>, vector<8x256xf32>
    %c1_i32_30 = arith.constant 1 : i32
    %70 = vector.broadcast %c1_i32_30 : i32 to vector<1x256xi32>
    %71 = arith.addi %22, %70 : vector<1x256xi32>
    %c3_i32_31 = arith.constant 3 : i32
    %72 = vector.broadcast %c3_i32_31 : i32 to vector<1x256xi32>
    %73 = arith.cmpi sge, %71, %72 : vector<1x256xi32>
    %c3_i32_32 = arith.constant 3 : i32
    %74 = vector.broadcast %c3_i32_32 : i32 to vector<1x256xi32>
    %75 = arith.subi %71, %74 : vector<1x256xi32>
    %76 = arith.select %73, %75, %71 : vector<1x256xi1>, vector<1x256xi32>
    %c1_i32_33 = arith.constant 1 : i32
    %77 = tpu.dynamic_rotate %69 by %c1_i32_33 dim 1 : vector<8x256xf32>, i32 -> vector<8x256xf32>
    %c2_i32_34 = arith.constant 2 : i32
    %78 = tpu.dynamic_rotate %69 by %c2_i32_34 dim 1 : vector<8x256xf32>, i32 -> vector<8x256xf32>
    %cst_35 = arith.constant 0.000000e+00 : f32
    %79 = vector.broadcast %cst_35 : f32 to vector<1x256xf32>
    %c0_i32_36 = arith.constant 0 : i32
    %80 = vector.broadcast %c0_i32_36 : i32 to vector<1x256xi32>
    %81 = arith.cmpi eq, %76, %80 : vector<1x256xi32>
    %82 = vector.broadcast %0 : f32 to vector<1x256xf32>
    %83 = arith.select %81, %82, %79 : vector<1x256xi1>, vector<1x256xf32>
    %c1_i32_37 = arith.constant 1 : i32
    %84 = vector.broadcast %c1_i32_37 : i32 to vector<1x256xi32>
    %85 = arith.cmpi eq, %76, %84 : vector<1x256xi32>
    %86 = vector.broadcast %3 : f32 to vector<1x256xf32>
    %87 = arith.select %85, %86, %83 : vector<1x256xi1>, vector<1x256xf32>
    %c2_i32_38 = arith.constant 2 : i32
    %88 = vector.broadcast %c2_i32_38 : i32 to vector<1x256xi32>
    %89 = arith.cmpi eq, %76, %88 : vector<1x256xi32>
    %90 = vector.broadcast %5 : f32 to vector<1x256xf32>
    %91 = arith.select %89, %90, %87 : vector<1x256xi1>, vector<1x256xf32>
    %92 = vector.broadcast %91 : vector<1x256xf32> to vector<8x256xf32>
    %93 = arith.mulf %92, %69 : vector<8x256xf32>
    %c1_i32_39 = arith.constant 1 : i32
    %94 = vector.broadcast %c1_i32_39 : i32 to vector<1x256xi32>
    %95 = arith.cmpi slt, %6, %94 : vector<1x256xi32>
    %96 = vector.shape_cast %95 : vector<1x256xi1> to vector<1x256xi1>
    %97 = vector.broadcast %96 : vector<1x256xi1> to vector<8x256xi1>
    %98 = arith.select %97, %31, %77 : vector<8x256xi1>, vector<8x256xf32>
    %cst_40 = arith.constant 0.000000e+00 : f32
    %99 = vector.broadcast %cst_40 : f32 to vector<1x256xf32>
    %c1_i32_41 = arith.constant 1 : i32
    %100 = vector.broadcast %c1_i32_41 : i32 to vector<1x256xi32>
    %101 = arith.cmpi eq, %76, %100 : vector<1x256xi32>
    %102 = vector.broadcast %1 : f32 to vector<1x256xf32>
    %103 = arith.select %101, %102, %99 : vector<1x256xi1>, vector<1x256xf32>
    %c2_i32_42 = arith.constant 2 : i32
    %104 = vector.broadcast %c2_i32_42 : i32 to vector<1x256xi32>
    %105 = arith.cmpi eq, %76, %104 : vector<1x256xi32>
    %106 = vector.broadcast %4 : f32 to vector<1x256xf32>
    %107 = arith.select %105, %106, %103 : vector<1x256xi1>, vector<1x256xf32>
    %108 = vector.broadcast %107 : vector<1x256xf32> to vector<8x256xf32>
    %109 = arith.mulf %108, %98 : vector<8x256xf32>
    %110 = arith.addf %93, %109 : vector<8x256xf32>
    %c2_i32_43 = arith.constant 2 : i32
    %111 = vector.broadcast %c2_i32_43 : i32 to vector<1x256xi32>
    %112 = arith.cmpi slt, %6, %111 : vector<1x256xi32>
    %113 = vector.shape_cast %112 : vector<1x256xi1> to vector<1x256xi1>
    %114 = vector.broadcast %113 : vector<1x256xi1> to vector<8x256xi1>
    %115 = arith.select %114, %32, %78 : vector<8x256xi1>, vector<8x256xf32>
    %cst_44 = arith.constant 0.000000e+00 : f32
    %116 = vector.broadcast %cst_44 : f32 to vector<1x256xf32>
    %c2_i32_45 = arith.constant 2 : i32
    %117 = vector.broadcast %c2_i32_45 : i32 to vector<1x256xi32>
    %118 = arith.cmpi eq, %76, %117 : vector<1x256xi32>
    %119 = vector.broadcast %2 : f32 to vector<1x256xf32>
    %120 = arith.select %118, %119, %116 : vector<1x256xi1>, vector<1x256xf32>
    %121 = vector.broadcast %120 : vector<1x256xf32> to vector<8x256xf32>
    %122 = arith.mulf %121, %115 : vector<8x256xf32>
    %123 = arith.addf %110, %122 : vector<8x256xf32>
    %c0_46 = arith.constant 0 : index
    %c0_47 = arith.constant 0 : index
    %124 = vector.load %arg6[%c0_46, %c0_47] : memref<8x256xf32, #tpu.memory_space<vmem>>, vector<8x256xf32>
    tpu.vector_store %arg6[%c0_46, %c0_47], %123 {strides = array<i32>} : memref<8x256xf32, #tpu.memory_space<vmem>>, vector<8x256xf32>,
    %c0_48 = arith.constant 0 : index
    %c0_49 = arith.constant 0 : index
    %125 = vector.load %arg4[%c0_48, %c0_49] : memref<8x256xf32, #tpu.memory_space<vmem>>, vector<8x256xf32>
    %c2_i32_50 = arith.constant 2 : i32
    %126 = vector.broadcast %c2_i32_50 : i32 to vector<1x256xi32>
    %127 = arith.addi %22, %126 : vector<1x256xi32>
    %c3_i32_51 = arith.constant 3 : i32
    %128 = vector.broadcast %c3_i32_51 : i32 to vector<1x256xi32>
    %129 = arith.cmpi sge, %127, %128 : vector<1x256xi32>
    %c3_i32_52 = arith.constant 3 : i32
    %130 = vector.broadcast %c3_i32_52 : i32 to vector<1x256xi32>
    %131 = arith.subi %127, %130 : vector<1x256xi32>
    %132 = arith.select %129, %131, %127 : vector<1x256xi1>, vector<1x256xi32>
    %c1_i32_53 = arith.constant 1 : i32
    %133 = tpu.dynamic_rotate %125 by %c1_i32_53 dim 1 : vector<8x256xf32>, i32 -> vector<8x256xf32>
    %c2_i32_54 = arith.constant 2 : i32
    %134 = tpu.dynamic_rotate %125 by %c2_i32_54 dim 1 : vector<8x256xf32>, i32 -> vector<8x256xf32>
    %cst_55 = arith.constant 0.000000e+00 : f32
    %135 = vector.broadcast %cst_55 : f32 to vector<1x256xf32>
    %c0_i32_56 = arith.constant 0 : i32
    %136 = vector.broadcast %c0_i32_56 : i32 to vector<1x256xi32>
    %137 = arith.cmpi eq, %132, %136 : vector<1x256xi32>
    %138 = vector.broadcast %0 : f32 to vector<1x256xf32>
    %139 = arith.select %137, %138, %135 : vector<1x256xi1>, vector<1x256xf32>
    %c1_i32_57 = arith.constant 1 : i32
    %140 = vector.broadcast %c1_i32_57 : i32 to vector<1x256xi32>
    %141 = arith.cmpi eq, %132, %140 : vector<1x256xi32>
    %142 = vector.broadcast %3 : f32 to vector<1x256xf32>
    %143 = arith.select %141, %142, %139 : vector<1x256xi1>, vector<1x256xf32>
    %c2_i32_58 = arith.constant 2 : i32
    %144 = vector.broadcast %c2_i32_58 : i32 to vector<1x256xi32>
    %145 = arith.cmpi eq, %132, %144 : vector<1x256xi32>
    %146 = vector.broadcast %5 : f32 to vector<1x256xf32>
    %147 = arith.select %145, %146, %143 : vector<1x256xi1>, vector<1x256xf32>
    %148 = vector.broadcast %147 : vector<1x256xf32> to vector<8x256xf32>
    %149 = arith.mulf %148, %125 : vector<8x256xf32>
    %c1_i32_59 = arith.constant 1 : i32
    %150 = vector.broadcast %c1_i32_59 : i32 to vector<1x256xi32>
    %151 = arith.cmpi slt, %6, %150 : vector<1x256xi32>
    %152 = vector.shape_cast %151 : vector<1x256xi1> to vector<1x256xi1>
    %153 = vector.broadcast %152 : vector<1x256xi1> to vector<8x256xi1>
    %154 = arith.select %153, %77, %133 : vector<8x256xi1>, vector<8x256xf32>
    %cst_60 = arith.constant 0.000000e+00 : f32
    %155 = vector.broadcast %cst_60 : f32 to vector<1x256xf32>
    %c1_i32_61 = arith.constant 1 : i32
    %156 = vector.broadcast %c1_i32_61 : i32 to vector<1x256xi32>
    %157 = arith.cmpi eq, %132, %156 : vector<1x256xi32>
    %158 = vector.broadcast %1 : f32 to vector<1x256xf32>
    %159 = arith.select %157, %158, %155 : vector<1x256xi1>, vector<1x256xf32>
    %c2_i32_62 = arith.constant 2 : i32
    %160 = vector.broadcast %c2_i32_62 : i32 to vector<1x256xi32>
    %161 = arith.cmpi eq, %132, %160 : vector<1x256xi32>
    %162 = vector.broadcast %4 : f32 to vector<1x256xf32>
    %163 = arith.select %161, %162, %159 : vector<1x256xi1>, vector<1x256xf32>
    %164 = vector.broadcast %163 : vector<1x256xf32> to vector<8x256xf32>
    %165 = arith.mulf %164, %154 : vector<8x256xf32>
    %166 = arith.addf %149, %165 : vector<8x256xf32>
    %c2_i32_63 = arith.constant 2 : i32
    %167 = vector.broadcast %c2_i32_63 : i32 to vector<1x256xi32>
    %168 = arith.cmpi slt, %6, %167 : vector<1x256xi32>
    %169 = vector.shape_cast %168 : vector<1x256xi1> to vector<1x256xi1>
    %170 = vector.broadcast %169 : vector<1x256xi1> to vector<8x256xi1>
    %171 = arith.select %170, %78, %134 : vector<8x256xi1>, vector<8x256xf32>
    %cst_64 = arith.constant 0.000000e+00 : f32
    %172 = vector.broadcast %cst_64 : f32 to vector<1x256xf32>
    %c2_i32_65 = arith.constant 2 : i32
    %173 = vector.broadcast %c2_i32_65 : i32 to vector<1x256xi32>
    %174 = arith.cmpi eq, %132, %173 : vector<1x256xi32>
    %175 = vector.broadcast %2 : f32 to vector<1x256xf32>
    %176 = arith.select %174, %175, %172 : vector<1x256xi1>, vector<1x256xf32>
    %177 = vector.broadcast %176 : vector<1x256xf32> to vector<8x256xf32>
    %178 = arith.mulf %177, %171 : vector<8x256xf32>
    %179 = arith.addf %166, %178 : vector<8x256xf32>
    %c0_66 = arith.constant 0 : index
    %c0_67 = arith.constant 0 : index
    %180 = vector.load %arg7[%c0_66, %c0_67] : memref<8x256xf32, #tpu.memory_space<vmem>>, vector<8x256xf32>
    tpu.vector_store %arg7[%c0_66, %c0_67], %179 {strides = array<i32>} : memref<8x256xf32, #tpu.memory_space<vmem>>, vector<8x256xf32>,
    return
  }
  func.func @transform_0(%arg0: i32) -> (i32, i32) {
    %c0_i32 = arith.constant 0 : i32
    %c0_i32_0 = arith.constant 0 : i32
    %c0_i32_1 = arith.constant 0 : i32
    return %c0_i32, %c0_i32_0 : i32, i32
  }
  func.func @transform_1(%arg0: i32) -> (i32, i32) {
    %c0_i32 = arith.constant 0 : i32
    %c0_i32_0 = arith.constant 0 : i32
    return %arg0, %c0_i32 : i32, i32
  }
  func.func @transform_2(%arg0: i32) -> (i32, i32) {
    %c0_i32 = arith.constant 0 : i32
    %c0_i32_0 = arith.constant 0 : i32
    return %arg0, %c0_i32 : i32, i32
  }
  func.func @transform_3(%arg0: i32) -> (i32, i32) {
    %c0_i32 = arith.constant 0 : i32
    %c0_i32_0 = arith.constant 0 : i32
    return %arg0, %c0_i32 : i32, i32
  }
  func.func @transform_4(%arg0: i32) -> (i32, i32) {
    %c0_i32 = arith.constant 0 : i32
    %c0_i32_0 = arith.constant 0 : i32
    return %arg0, %c0_i32 : i32, i32
  }
  func.func @transform_5(%arg0: i32) -> (i32, i32) {
    %c0_i32 = arith.constant 0 : i32
    %c0_i32_0 = arith.constant 0 : i32
    return %arg0, %c0_i32 : i32, i32
  }
  func.func @transform_6(%arg0: i32) -> (i32, i32) {
    %c0_i32 = arith.constant 0 : i32
    %c0_i32_0 = arith.constant 0 : i32
    return %arg0, %c0_i32 : i32, i32
  }
}

</mosaic_0001>

<llo_original>
// kernel: triangular_cross_stitch.1
$region0: #{triangular_cross_stitch.1}
  #allocation0 [shape = 'u32[]', space=smem, size = 0x4, offset = 0x4, fixed_abs, tag = 'smem constant byte address 0x4 - core index']
  #allocation1 [shape = 'u32[72,128]{1,0:T(1,128)}', space=vmem, size = 0x9000, scoped, tag = 'internal scratch']
  %s0 = inlined_call_operand.vmem [shape: f32[3,3], index: 0, kind: input, shape index: {}]
  %s1 = inlined_call_operand.vmem [shape: f32[8,256], index: 1, kind: input, shape index: {}]
  %s2 = inlined_call_operand.vmem [shape: f32[8,256], index: 2, kind: input, shape index: {}]
  %s3 = inlined_call_operand.vmem [shape: f32[8,256], index: 3, kind: input, shape index: {}]
  %s4 = inlined_call_operand.vmem [shape: f32[8,256], index: 4, kind: output, shape index: {0}]
  %s5 = inlined_call_operand.vmem [shape: f32[8,256], index: 5, kind: output, shape index: {1}]
  %s6 = inlined_call_operand.vmem [shape: f32[8,256], index: 6, kind: output, shape index: {2}]
  %7 = xla_tuple %s4, %s5, %s6
  %s8 = sld [smem:[#allocation0]]
  $region46: #{triangular_cross_stitch.1} parent=0
    _
  %s10 = ssub.s32 1, %s8
  %s11 = scalar_select 0, %s10, %s8
  $region1: #{triangular_cross_stitch.1} parent=0
    #allocation2 [shape = 'u8[2048]{0}', space=smem, size = 0x800, scoped, tag = 'input window, operand 0, single buffered']
    #allocation3 [shape = 's32[1]{0}', space=sflag, size = 0x4, scoped, tag = 'scoped memory for triangular_cross_stitch.1']
    %12 = vsyncpa [#allocation3], 0
    // Predicated region
    $region2: #{triangular_cross_stitch.1} parent=1 // pred_check
      _
    $region3: #{triangular_cross_stitch.1} parent=1 // pred_check_branch
      %14 = sbr.rel (0) target = $region5
    $region4: #{triangular_cross_stitch.1} parent=1 // pred_region
      %16 = vsyncadd [#allocation3], 0
      %s18 = sshll.u32 %s0, 4
      %s19 = int_to_ptr.vmem [resolvable:$true] %s18
      %21 = dma.vmem_to_smem %s19, 64, [#allocation2], [#allocation3]
    $region5: #{triangular_cross_stitch.1} parent=1 // pred_fallthru
      _
    // Predicated region
    $region6: #{triangular_cross_stitch.1} parent=1 // pred_check
      _
    $region7: #{triangular_cross_stitch.1} parent=1 // pred_check_branch
      %23 = sbr.rel (0) target = $region9
    $region8: #{triangular_cross_stitch.1} parent=1 // pred_region
      _
    $region9: #{triangular_cross_stitch.1} parent=1 // pred_fallthru
      _
    // Predicated region
    $region10: #{triangular_cross_stitch.1} parent=1 // pred_check
      _
    $region11: #{triangular_cross_stitch.1} parent=1 // pred_check_branch
      %25 = sbr.rel (0) target = $region13
    $region12: #{triangular_cross_stitch.1} parent=1 // pred_region
      _
    $region13: #{triangular_cross_stitch.1} parent=1 // pred_fallthru
      _
    // Predicated region
    $region14: #{triangular_cross_stitch.1} parent=1 // pred_check
      _
    $region15: #{triangular_cross_stitch.1} parent=1 // pred_check_branch
      %27 = sbr.rel (0) target = $region17
    $region16: #{triangular_cross_stitch.1} parent=1 // pred_region
      _
    $region17: #{triangular_cross_stitch.1} parent=1 // pred_fallthru
      _
    // Predicated region
    $region18: #{triangular_cross_stitch.1} parent=1 // pred_check
      _
    $region19: #{triangular_cross_stitch.1} parent=1 // pred_check_branch
      %29 = sbr.rel (0) target = $region21
    $region20: #{triangular_cross_stitch.1} parent=1 // pred_region
      %31 = dma.done [#allocation3], 64
    $region21: #{triangular_cross_stitch.1} parent=1 // pred_fallthru
      _
    %32 = sfence
    %s33 = sld [smem:[#allocation2]]
    %s34 = sld [smem:[#allocation2 + $0x1]]
    %s35 = sld [smem:[#allocation2 + $0x2]]
    %s36 = sld [smem:[#allocation2 + $0x81]]
    %s37 = sld [smem:[#allocation2 + $0x82]]
    %s38 = sld [smem:[#allocation2 + $0x102]]
    %v39 = vlaneseq
    %v40 = vand.u32 %v39, 127
    %v41 = vadd.s32 %v40, 128
    %vm42 = vcmp.lt.s32.totalorder %v40, 0
    %v43 = vsub.s32 0, %v40
    %v44 = vsel %vm42, %v43, %v40
    %v45 = vand.u32 %v44, 65535
    %v46 = vshrl.u32 %v44, 16
    %v48 = vmul.u32 %v45, 43691
    %v49 = vmul.u32 %v45, 43690
    %v50 = vmul.u32 %v46, 43691
    %v51 = vmul.u32 %v46, 43690
    %v52 = vshll.u32 %v49, 16
    %v53 = vshrl.u32 %v49, 16
    %v54 = vshll.u32 %v50, 16
    %v55 = vshrl.u32 %v50, 16
    %vm56 = vc.u32 %v48, %v52
    %v57 = vsel %vm56, 1, 0
    %v58 = vadd.s32 %v48, %v52
    %v59 = vadd.s32 %v51, %v57
    %vm60 = vc.u32 %v58, %v54
    %v61 = vsel %vm60, 1, 0
    %v62 = vadd.s32 %v58, %v54
    %v63 = vadd.s32 %v59, %v61
    %v64 = vadd.s32 %v63, %v53
    %v65 = vadd.s32 %v64, %v55
    %v66 = vshrl.u32 %v65, 1
    %v67 = vmul.u32 %v66, 3
    %v68 = vsub.s32 %v44, %v67
    %v69 = vsub.s32 0, %v68
    %v70 = vsel %vm42, %v69, %v68
    %vm71 = vcmp.lt.s32.totalorder %v41, 0
    %v72 = vsub.s32 0, %v41
    %v73 = vsel %vm71, %v72, %v41
    %v74 = vand.u32 %v73, 65535
    %v75 = vshrl.u32 %v73, 16
    %v77 = vmul.u32 %v74, 43691
    %v78 = vmul.u32 %v74, 43690
    %v79 = vmul.u32 %v75, 43691
    %v80 = vmul.u32 %v75, 43690
    %v81 = vshll.u32 %v78, 16
    %v82 = vshrl.u32 %v78, 16
    %v83 = vshll.u32 %v79, 16
    %v84 = vshrl.u32 %v79, 16
    %vm85 = vc.u32 %v77, %v81
    %v86 = vsel %vm85, 1, 0
    %v87 = vadd.s32 %v77, %v81
    %v88 = vadd.s32 %v80, %v86
    %vm89 = vc.u32 %v87, %v83
    %v90 = vsel %vm89, 1, 0
    %v91 = vadd.s32 %v87, %v83
    %v92 = vadd.s32 %v88, %v90
    %v93 = vadd.s32 %v92, %v82
    %v94 = vadd.s32 %v93, %v84
    %v95 = vshrl.u32 %v94, 1
    %v96 = vmul.u32 %v95, 3
    %v97 = vsub.s32 %v73, %v96
    %v98 = vsub.s32 0, %v97
    %v99 = vsel %vm71, %v98, %v97
    %vm100 = vcmp.ne.s32.totalorder %v70, 0
    %vm101 = vcmp.ne.s32.totalorder %v99, 0
    %vm102 = vcmp.lt.s32.totalorder %v70, 0
    %vm103 = vcmp.lt.s32.totalorder %v99, 0
    %vm104 = vmand %vm102, %vm100
    %vm105 = vmand %vm103, %vm101
    %v106 = vadd.s32 %v70, 3
    %v107 = vadd.s32 %v99, 3
    %v108 = vsel %vm104, %v106, %v70
    %v109 = vsel %vm105, %v107, %v99
    %v110 = vld [vmem:[%s1] sm:$0xff]
    %v111 = vld [vmem:[%s1 + $0x8] sm:$0xff]
    %vm112 = vcmp.ge.s32.totalorder %v108, 3
    %vm113 = vcmp.ge.s32.totalorder %v109, 3
    %v114 = vsub.s32 %v108, 3
    %v115 = vsub.s32 %v109, 3
    %v116 = vsel %vm112, %v114, %v108
    %v117 = vsel %vm113, %v115, %v109
    %118 = vrot.lane.b32.xlu0 %v110, 1
    %v119 = vpop.permute.xlu0 %118
    %120 = vrot.lane.b32.xlu0 %v111, 1
    %v121 = vpop.permute.xlu0 %120
    %vm122 = vcmp.lt.s32.totalorder %v40, 1
    %v123 = vsel %vm122, %v119, %v121
    %v124 = vsel %vm122, %v121, %v119
    %125 = vrot.lane.b32.xlu0 %v110, 2
    %v126 = vpop.permute.xlu0 %125
    %127 = vrot.lane.b32.xlu0 %v111, 2
    %v128 = vpop.permute.xlu0 %127
    %vm129 = vcmp.lt.s32.totalorder %v40, 2
    %v130 = vsel %vm129, %v126, %v128
    %v131 = vsel %vm129, %v128, %v126
    %vm132 = vcmp.eq.s32.totalorder %v116, 0
    %vm133 = vcmp.eq.s32.totalorder %v117, 0
    %v134 = vstv %s33
    %v135 = vsel %vm132, %v134, 0.0
    %v136 = vsel %vm133, %v134, 0.0
    %vm137 = vcmp.eq.s32.totalorder %v116, 1
    %vm138 = vcmp.eq.s32.totalorder %v117, 1
    %v139 = vstv %s36
    %v140 = vsel %vm137, %v139, %v135
    %v141 = vsel %vm138, %v139, %v136
    %vm142 = vcmp.eq.s32.totalorder %v116, 2
    %vm143 = vcmp.eq.s32.totalorder %v117, 2
    %v144 = vstv %s38
    %v145 = vsel %vm142, %v144, %v140
    %v146 = vsel %vm143, %v144, %v141
    %v147 = vmul.f32 %v145, %v110
    %v148 = vmul.f32 %v146, %v111
    %v149 = vstv %s34
    %v150 = vsel %vm137, %v149, 0.0
    %v151 = vsel %vm138, %v149, 0.0
    %v152 = vstv %s37
    %v153 = vsel %vm142, %v152, %v150
    %v154 = vsel %vm143, %v152, %v151
    %v155 = vmul.f32 %v153, %v124
    %v156 = vmul.f32 %v154, %v123
    %v157 = vadd.f32 %v147, %v155
    %v158 = vadd.f32 %v148, %v156
    %v159 = vstv %s35
    %v160 = vsel %vm142, %v159, 0.0
    %v161 = vsel %vm143, %v159, 0.0
    %v162 = vmul.f32 %v160, %v131
    %v163 = vmul.f32 %v161, %v130
    %v164 = vadd.f32 %v157, %v162
    %v165 = vadd.f32 %v158, %v163
    %166 = vst [vmem:[%s4] sm:$0xff] %v164
    %167 = vst [vmem:[%s4 + $0x8] sm:$0xff] %v165
    %v168 = vld [vmem:[%s2] sm:$0xff]
    %v169 = vld [vmem:[%s2 + $0x8] sm:$0xff]
    %v170 = vadd.s32 %v108, 1
    %v171 = vadd.s32 %v109, 1
    %vm172 = vcmp.ge.s32.totalorder %v170, 3
    %vm173 = vcmp.ge.s32.totalorder %v171, 3
    %v174 = vsub.s32 %v170, 3
    %v175 = vsub.s32 %v171, 3
    %v176 = vsel %vm172, %v174, %v170
    %v177 = vsel %vm173, %v175, %v171
    %178 = vrot.lane.b32.xlu0 %v168, 1
    %v179 = vpop.permute.xlu0 %178
    %180 = vrot.lane.b32.xlu0 %v169, 1
    %v181 = vpop.permute.xlu0 %180
    %v182 = vsel %vm122, %v179, %v181
    %v183 = vsel %vm122, %v181, %v179
    %184 = vrot.lane.b32.xlu0 %v168, 2
    %v185 = vpop.permute.xlu0 %184
    %186 = vrot.lane.b32.xlu0 %v169, 2
    %v187 = vpop.permute.xlu0 %186
    %v188 = vsel %vm129, %v185, %v187
    %v189 = vsel %vm129, %v187, %v185
    %vm190 = vcmp.eq.s32.totalorder %v176, 0
    %vm191 = vcmp.eq.s32.totalorder %v177, 0
    %v192 = vsel %vm190, %v134, 0.0
    %v193 = vsel %vm191, %v134, 0.0
    %vm194 = vcmp.eq.s32.totalorder %v176, 1
    %vm195 = vcmp.eq.s32.totalorder %v177, 1
    %v196 = vsel %vm194, %v139, %v192
    %v197 = vsel %vm195, %v139, %v193
    %vm198 = vcmp.eq.s32.totalorder %v176, 2
    %vm199 = vcmp.eq.s32.totalorder %v177, 2
    %v200 = vsel %vm198, %v144, %v196
    %v201 = vsel %vm199, %v144, %v197
    %v202 = vmul.f32 %v200, %v168
    %v203 = vmul.f32 %v201, %v169
    %vm204 = vcmp.lt.s32.totalorder %v41, 1
    %v205 = vsel %vm122, 1, 0
    %v206 = vsel %vm204, 1, 0
    %vm207 = vcmp.eq.s32.totalorder %v205, 1
    %vm208 = vcmp.eq.s32.totalorder %v206, 1
    %v209 = vsel %vm207, %v124, %v183
    %v210 = vsel %vm208, %v123, %v182
    %v211 = vsel %vm194, %v149, 0.0
    %v212 = vsel %vm195, %v149, 0.0
    %v213 = vsel %vm198, %v152, %v211
    %v214 = vsel %vm199, %v152, %v212
    %v215 = vmul.f32 %v213, %v209
    %v216 = vmul.f32 %v214, %v210
    %v217 = vadd.f32 %v202, %v215
    %v218 = vadd.f32 %v203, %v216
    %vm219 = vcmp.lt.s32.totalorder %v41, 2
    %v220 = vsel %vm129, 1, 0
    %v221 = vsel %vm219, 1, 0
    %vm222 = vcmp.eq.s32.totalorder %v220, 1
    %vm223 = vcmp.eq.s32.totalorder %v221, 1
    %v224 = vsel %vm222, %v131, %v189
    %v225 = vsel %vm223, %v130, %v188
    %v226 = vsel %vm198, %v159, 0.0
    %v227 = vsel %vm199, %v159, 0.0
    %v228 = vmul.f32 %v226, %v224
    %v229 = vmul.f32 %v227, %v225
    %v230 = vadd.f32 %v217, %v228
    %v231 = vadd.f32 %v218, %v229
    %232 = vst [vmem:[%s5] sm:$0xff] %v230
    %233 = vst [vmem:[%s5 + $0x8] sm:$0xff] %v231
    %v234 = vld [vmem:[%s3] sm:$0xff]
    %v235 = vld [vmem:[%s3 + $0x8] sm:$0xff]
    %v236 = vadd.s32 %v108, 2
    %v237 = vadd.s32 %v109, 2
    %vm238 = vcmp.ge.s32.totalorder %v236, 3
    %vm239 = vcmp.ge.s32.totalorder %v237, 3
    %v240 = vsub.s32 %v236, 3
    %v241 = vsub.s32 %v237, 3
    %v242 = vsel %vm238, %v240, %v236
    %v243 = vsel %vm239, %v241, %v237
    %244 = vrot.lane.b32.xlu0 %v234, 1
    %v245 = vpop.permute.xlu0 %244
    %246 = vrot.lane.b32.xlu0 %v235, 1
    %v247 = vpop.permute.xlu0 %246
    %v248 = vsel %vm122, %v245, %v247
    %v249 = vsel %vm122, %v247, %v245
    %250 = vrot.lane.b32.xlu0 %v234, 2
    %v251 = vpop.permute.xlu0 %250
    %252 = vrot.lane.b32.xlu0 %v235, 2
    %v253 = vpop.permute.xlu0 %252
    %v254 = vsel %vm129, %v251, %v253
    %v255 = vsel %vm129, %v253, %v251
    %vm256 = vcmp.eq.s32.totalorder %v242, 0
    %vm257 = vcmp.eq.s32.totalorder %v243, 0
    %v258 = vsel %vm256, %v134, 0.0
    %v259 = vsel %vm257, %v134, 0.0
    %vm260 = vcmp.eq.s32.totalorder %v242, 1
    %vm261 = vcmp.eq.s32.totalorder %v243, 1
    %v262 = vsel %vm260, %v139, %v258
    %v263 = vsel %vm261, %v139, %v259
    %vm264 = vcmp.eq.s32.totalorder %v242, 2
    %vm265 = vcmp.eq.s32.totalorder %v243, 2
    %v266 = vsel %vm264, %v144, %v262
    %v267 = vsel %vm265, %v144, %v263
    %v268 = vmul.f32 %v266, %v234
    %v269 = vmul.f32 %v267, %v235
    %v270 = vsel %vm207, %v183, %v249
    %v271 = vsel %vm208, %v182, %v248
    %v272 = vsel %vm260, %v149, 0.0
    %v273 = vsel %vm261, %v149, 0.0
    %v274 = vsel %vm264, %v152, %v272
    %v275 = vsel %vm265, %v152, %v273
    %v276 = vmul.f32 %v274, %v270
    %v277 = vmul.f32 %v275, %v271
    %v278 = vadd.f32 %v268, %v276
    %v279 = vadd.f32 %v269, %v277
    %v280 = vsel %vm222, %v189, %v255
    %v281 = vsel %vm223, %v188, %v254
    %v282 = vsel %vm264, %v159, 0.0
    %v283 = vsel %vm265, %v159, 0.0
    %v284 = vmul.f32 %v282, %v280
    %v285 = vmul.f32 %v283, %v281
    %v286 = vadd.f32 %v278, %v284
    %v287 = vadd.f32 %v279, %v285
    %288 = vst [vmem:[%s6] sm:$0xff] %v286
    %289 = vst [vmem:[%s6 + $0x8] sm:$0xff] %v287
    // Predicated region
    $region22: #{triangular_cross_stitch.1} parent=1 // pred_check
      _
    $region23: #{triangular_cross_stitch.1} parent=1 // pred_check_branch
      %291 = sbr.rel (0) target = $region25
    $region24: #{triangular_cross_stitch.1} parent=1 // pred_region
      _
    $region25: #{triangular_cross_stitch.1} parent=1 // pred_fallthru
      _
    // Predicated region
    $region26: #{triangular_cross_stitch.1} parent=1 // pred_check
      _
    $region27: #{triangular_cross_stitch.1} parent=1 // pred_check_branch
      %293 = sbr.rel (0) target = $region29
    $region28: #{triangular_cross_stitch.1} parent=1 // pred_region
      _
    $region29: #{triangular_cross_stitch.1} parent=1 // pred_fallthru
      _
    // Predicated region
    $region30: #{triangular_cross_stitch.1} parent=1 // pred_check
      _
    $region31: #{triangular_cross_stitch.1} parent=1 // pred_check_branch
      %295 = sbr.rel (0) target = $region33
    $region32: #{triangular_cross_stitch.1} parent=1 // pred_region
      _
    $region33: #{triangular_cross_stitch.1} parent=1 // pred_fallthru
      _
    // Predicated region
    $region34: #{triangular_cross_stitch.1} parent=1 // pred_check
      _
    $region35: #{triangular_cross_stitch.1} parent=1 // pred_check_branch
      %297 = sbr.rel (0) target = $region37
    $region36: #{triangular_cross_stitch.1} parent=1 // pred_region
      _
    $region37: #{triangular_cross_stitch.1} parent=1 // pred_fallthru
      _
    // Predicated region
    $region38: #{triangular_cross_stitch.1} parent=1 // pred_check
      _
    $region39: #{triangular_cross_stitch.1} parent=1 // pred_check_branch
      %299 = sbr.rel (0) target = $region41
    $region40: #{triangular_cross_stitch.1} parent=1 // pred_region
      _
    $region41: #{triangular_cross_stitch.1} parent=1 // pred_fallthru
      _
    // Predicated region
    $region42: #{triangular_cross_stitch.1} parent=1 // pred_check
      _
    $region43: #{triangular_cross_stitch.1} parent=1 // pred_check_branch
      %301 = sbr.rel (0) target = $region45
    $region44: #{triangular_cross_stitch.1} parent=1 // pred_region
      _
    $region45: #{triangular_cross_stitch.1} parent=1 // pred_fallthru
      _
    %302 = vsyncpa [#allocation3], 1

</llo_original>
